<compile_context>
chip_gen: v5e
topology: v5e:2x2
jax: 0.10.0
libtpu: 0.0.40
codegen_flags: <defaults>
</compile_context>

<pallas_src>
import functools

import jax
import jax.numpy as jnp
from jax.experimental import pallas as pl
from jax.experimental.pallas import tpu as pltpu

LANE = 128
SUBLANE = 8


def _round_up(n, m):
    return ((n + m - 1) // m) * m


def _pad2(a, rows, cols):
    return jnp.pad(a, ((0, rows - a.shape[0]), (0, cols - a.shape[1])))


def dual_attn_kernel(x_ref, wcat_ref, b1_ref, w2_ref, b2_ref, w3_ref, b3_ref,
                     w4_ref, b4_ref, recon_ref, pam_ref, xw_ref,
                     *, n_valid, d_valid, steps):
    s = pl.program_id(0)            # row shard (parallel axis; one per TensorCore)
    i = pl.program_id(1)            # row tile within shard (pam reduction axis)
    tm = x_ref.shape[0]
    DP = pam_ref.shape[-1]
    dt = wcat_ref.dtype             # MXU operand dtype (f32 or bf16)

    # Zero the resident pam accumulator and the scratch padding lanes once per
    # shard (lanes >= d_valid of xw stay zero for every subsequent step).
    @pl.when(i == 0)
    def _():
        pam_ref[...] = jnp.zeros_like(pam_ref)
        xw_ref[...] = jnp.zeros_like(xw_ref)

    # Widen x from D to 128 lanes via the VMEM scratch (HBM only carries D lanes).
    xw_ref[:, :d_valid] = x_ref[...]
    x = xw_ref[...].astype(dt)                               # [tm, DP]

    # Fused first layer: one [tm,128]@[128,256] matmul yields both the pairwise
    # scores (x @ wp) and the pfc-scaled encoder pre-activation (x @ (pfc*w1)).
    both = jnp.dot(x, wcat_ref[...], preferred_element_type=jnp.float32)
    scores = both[:, :DP]                                    # [tm, DP]
    h1 = jnp.maximum(both[:, DP:] + b1_ref[...], 0.0)        # [tm, HP]

    # Pairwise softmax (padded feature lanes masked out; EXACT reciprocal).
    lane_ok = jax.lax.broadcasted_iota(jnp.int32, (1, DP), 1) < d_valid
    scores = jnp.where(lane_ok, scores, -jnp.inf)
    m = jnp.max(scores, axis=-1, keepdims=True)
    e = jnp.exp(scores - m)
    coeffs = e / jnp.sum(e, axis=-1, keepdims=True)

    # Rows beyond the true batch are padding: they must not contribute to pam.
    row_start = (s * steps + i) * tm
    row_ok = (row_start
              + jax.lax.broadcasted_iota(jnp.int32, (tm, 1), 0)) < n_valid
    coeffs = jnp.where(row_ok, coeffs, 0.0)

    # pam += coeffs^T @ coeffs, contracting over the row axis directly on the
    # MXU (no explicit transpose); f32 accumulation into the resident block.
    pam_ref[...] += jax.lax.dot_general(
        coeffs.astype(dt), coeffs.astype(dt),
        dimension_numbers=(((0,), (0,)), ((), ())),
        preferred_element_type=jnp.float32)

    # Remaining encoder/decoder MLP (elementwise math in f32).
    h2 = jnp.maximum(
        jnp.dot(h1.astype(dt), w2_ref[...],
                preferred_element_type=jnp.float32) + b2_ref[...], 0.0)
    h3 = jnp.maximum(
        jnp.dot(h2.astype(dt), w3_ref[...],
                preferred_element_type=jnp.float32) + b3_ref[...], 0.0)
    logits = jnp.dot(h3.astype(dt), w4_ref[...],
                     preferred_element_type=jnp.float32) + b4_ref[...]
    # Store only the D valid lanes (recon stays [N, D] in HBM).
    recon_ref[...] = jax.nn.sigmoid(logits)[:, :d_valid]


def dual_attention_autoencoder(x, params, *, row_tile=2048, num_row_shards=1,
                               matmul_dtype=jnp.bfloat16):
    """x: [N, D] float32.  Returns (reconstructed [N, D],
    pairwise_attention_matrix [D, D], per_feature_attention_coeffs [D]).

    num_row_shards=2 uses both TensorCores on dual-TC parts (v7x / v5p).
    matmul_dtype=jnp.float32 gives a bit-tight MXU path for verification.
    """
    N, D = x.shape
    H = params["w1"].shape[1]
    Hh = params["w2"].shape[1]

    DP = _round_up(D, LANE)
    HP = _round_up(H, LANE)
    HhP = _round_up(Hh, LANE)

    S = max(1, int(num_row_shards))
    tm = min(_round_up(row_tile, SUBLANE), _round_up(N, SUBLANE))
    steps = max(1, -(-N // (S * tm)))
    NP = S * steps * tm

    # Per-feature softmax depends only on the parameter -> compute once here
    # (feedback), fold it into w1, and fuse [wp | pfc*w1] into one weight.
    pfc = jax.nn.softmax(params["pf"].reshape(-1))
    w1s = params["w1"] * pfc[:, None]
    wcat = jnp.concatenate([_pad2(params["wp"], DP, DP),
                            _pad2(w1s, DP, HP)], axis=1).astype(matmul_dtype)
    b1 = _pad2(params["b1"], 1, HP)
    w2 = _pad2(params["w2"], HP, HhP).astype(matmul_dtype)
    b2 = _pad2(params["b2"], 1, HhP)
    w3 = _pad2(params["w3"], HhP, HP).astype(matmul_dtype)
    b3 = _pad2(params["b3"], 1, HP)
    w4 = _pad2(params["w4"], HP, DP).astype(matmul_dtype)
    b4 = _pad2(params["b4"], 1, DP)

    # Row padding only: x stays D lanes wide in HBM (no 32x lane inflation).
    xp = jnp.pad(x, ((0, NP - N), (0, 0)))

    def rows(s, i):
        return (s * steps + i, 0)

    def const(shape):
        return pl.BlockSpec(shape, lambda s, i: (0, 0))

    in_specs = [
        pl.BlockSpec((tm, D), rows),                 # x  : tiled over rows, D lanes
        const((DP, DP + HP)),                        # [wp | pfc*w1]
        const((1, HP)),                              # b1
        const((HP, HhP)), const((1, HhP)),           # w2, b2
        const((HhP, HP)), const((1, HP)),            # w3, b3
        const((HP, DP)), const((1, DP)),             # w4, b4
    ]
    out_shapes = (
        jax.ShapeDtypeStruct((NP, D), jnp.float32),      # recon (narrow in HBM)
        jax.ShapeDtypeStruct((S * DP, DP), jnp.float32), # per-shard pam partials
    )
    out_specs = (
        pl.BlockSpec((tm, D), rows),
        pl.BlockSpec((DP, DP), lambda s, i: (s, 0)),     # resident per shard
    )

    kernel = functools.partial(dual_attn_kernel,
                               n_valid=N, d_valid=D, steps=steps)

    recon_p, pam_p = pl.pallas_call(
        kernel,
        out_shape=out_shapes,
        grid=(S, steps),
        in_specs=in_specs,
        out_specs=out_specs,
        scratch_shapes=[pltpu.VMEM((tm, DP), jnp.float32)],   # x lane-widening buffer
        compiler_params=pltpu.CompilerParams(
            # shard axis parallel (dual-TC), row-tile axis carries the pam
            # reduction -> arbitrary (and is last, per convention).
            dimension_semantics=("parallel", "arbitrary"),
            # 48 MiB is safe on v5e/v6e (128 MiB) and v7x (64 MiB); supports
            # tm up to ~4096.  Push tm to ~8192 only on the 128-MiB parts.
            vmem_limit_bytes=48 * 1024 * 1024),
    )(xp, wcat, b1, w2, b2, w3, b3, w4, b4)

    recon = recon_p[:N]
    pam = pam_p.reshape(S, DP, DP).sum(axis=0)[:D, :D]
    return recon, pam, pfc


def init_params(key, input_dim, hidden_dim):
    ks = jax.random.split(key, 10)
    half = hidden_dim // 2

    def xavier(k, fan_in, fan_out, shape):
        bound = (6.0 / (fan_in + fan_out)) ** 0.5
        return jax.random.uniform(k, shape, jnp.float32, -bound, bound)

    def linear(kw, kb, fan_in, fan_out):
        # PyTorch nn.Linear default init, stored pre-transposed [in, out].
        bound = 1.0 / (fan_in ** 0.5)
        w = jax.random.uniform(kw, (fan_in, fan_out), jnp.float32, -bound, bound)
        b = jax.random.uniform(kb, (1, fan_out), jnp.float32, -bound, bound)
        return w, b

    wp = xavier(ks[0], input_dim, input_dim, (input_dim, input_dim))
    pf = jax.random.uniform(ks[1], (1, input_dim), jnp.float32, 0.0, 1.0)
    w1, b1 = linear(ks[2], ks[3], input_dim, hidden_dim)
    w2, b2 = linear(ks[4], ks[5], hidden_dim, half)
    w3, b3 = linear(ks[6], ks[7], half, hidden_dim)
    w4, b4 = linear(ks[8], ks[9], hidden_dim, input_dim)
    return dict(wp=wp, pf=pf, w1=w1, b1=b1, w2=w2, b2=b2,
                w3=w3, b3=b3, w4=w4, b4=b4)


def reference(x, p):
    """Pure-JAX reference mirroring the PyTorch forward (f32 throughout)."""
    scores = x @ p["wp"]
    coeffs = jax.nn.softmax(scores, axis=-1)
    pam = coeffs.T @ coeffs
    pfc = jax.nn.softmax(p["pf"].reshape(-1))
    attended = x * pfc
    h = jax.nn.relu(attended @ p["w1"] + p["b1"])
    h = jax.nn.relu(h @ p["w2"] + p["b2"])
    h = jax.nn.relu(h @ p["w3"] + p["b3"])
    recon = jax.nn.sigmoid(h @ p["w4"] + p["b4"])
    return recon, pam, pfc


if __name__ == "__main__":
    input_dim = 4      # module slices 4 network-traffic features (cols 15:19)
    hidden_dim = 64    # matches the training script's hidden_dim
    batch = 8

    key = jax.random.PRNGKey(0)
    kx, kp = jax.random.split(key)
    x = jax.random.uniform(kx, (batch, input_dim), jnp.float32)  # MinMax-scaled [0,1]
    params = init_params(kp, input_dim, hidden_dim)

    r_exp, pam_exp, pfc_exp = reference(x, params)

    # f32 MXU path, single shard: tight correctness check (exact softmax recip).
    recon, pam, pfc = dual_attention_autoencoder(x, params,
                                                 matmul_dtype=jnp.float32)
    jax.block_until_ready((recon, pam, pfc))
    assert jnp.allclose(recon, r_exp, atol=2e-4), "reconstruction mismatch (f32)"
    assert jnp.allclose(pam, pam_exp, atol=2e-4), "pairwise attention mismatch (f32)"
    assert jnp.allclose(pfc, pfc_exp, atol=1e-6), "per-feature attention mismatch"

    # Dual-TensorCore style split (v7x): parallel shard axis + per-shard pam
    # partials + row-padding masks all exercised.
    recon2, pam2, _ = dual_attention_autoencoder(
        x, params, matmul_dtype=jnp.float32, num_row_shards=2)
    jax.block_until_ready((recon2, pam2))
    assert jnp.allclose(recon2, r_exp, atol=2e-4), "reconstruction mismatch (sharded)"
    assert jnp.allclose(pam2, pam_exp, atol=2e-4), "pairwise attention mismatch (sharded)"

    # Ragged batch with >1 grid step: checks pam accumulation across tiles and
    # the batch-padding row mask.
    x13 = jax.random.uniform(jax.random.PRNGKey(1), (13, input_dim), jnp.float32)
    r13_exp, p13_exp, _ = reference(x13, params)
    r13, p13, _ = dual_attention_autoencoder(
        x13, params, matmul_dtype=jnp.float32, row_tile=8)
    jax.block_until_ready((r13, p13))
    assert jnp.allclose(r13, r13_exp, atol=2e-4), "reconstruction mismatch (ragged)"
    assert jnp.allclose(p13, p13_exp, atol=2e-4), "pairwise attention mismatch (ragged)"

    # Default bf16 MXU path: smoke check against the f32 reference.
    recon16, pam16, _ = dual_attention_autoencoder(x, params)
    jax.block_until_ready((recon16, pam16))
    assert jnp.allclose(recon16, r_exp, atol=5e-2), "bf16 reconstruction mismatch"
    assert jnp.allclose(pam16, pam_exp, atol=5e-2), "bf16 pairwise attention mismatch"

    print("KERNEL_OK")
</pallas_src>

<mosaic_0001>
module attributes {stable_mosaic.version = 11 : i64} {
  func.func @dual_attn_kernel(%arg0: i32, %arg1: i32, %arg2: memref<8x4xf32, #tpu.memory_space<vmem>>, %arg3: memref<128x256xf32, #tpu.memory_space<vmem>>, %arg4: memref<1x128xf32, #tpu.memory_space<vmem>>, %arg5: memref<128x128xf32, #tpu.memory_space<vmem>>, %arg6: memref<1x128xf32, #tpu.memory_space<vmem>>, %arg7: memref<128x128xf32, #tpu.memory_space<vmem>>, %arg8: memref<1x128xf32, #tpu.memory_space<vmem>>, %arg9: memref<128x128xf32, #tpu.memory_space<vmem>>, %arg10: memref<1x128xf32, #tpu.memory_space<vmem>>, %arg11: memref<8x4xf32, #tpu.memory_space<vmem>>, %arg12: memref<128x128xf32, #tpu.memory_space<vmem>>, %arg13: memref<8x128xf32, #tpu.memory_space<vmem>>) attributes {dimension_semantics = [#tpu.dimension_semantics<parallel>, #tpu.dimension_semantics<arbitrary>], iteration_bounds = array<i64: 1, 1>, scalar_prefetch = 0 : i64, scratch_operands = 1 : i64, tpu.core_type = #tpu.core_type<tc>, window_params = [{transform_indices = @transform_0, window_bounds = array<i64: 8, 4>}, {pipeline_mode = #tpu.pipeline_mode<synchronous>, transform_indices = @transform_1, window_bounds = array<i64: 128, 256>}, {pipeline_mode = #tpu.pipeline_mode<synchronous>, transform_indices = @transform_2, window_bounds = array<i64: 1, 128>}, {pipeline_mode = #tpu.pipeline_mode<synchronous>, transform_indices = @transform_3, window_bounds = array<i64: 128, 128>}, {pipeline_mode = #tpu.pipeline_mode<synchronous>, transform_indices = @transform_4, window_bounds = array<i64: 1, 128>}, {pipeline_mode = #tpu.pipeline_mode<synchronous>, transform_indices = @transform_5, window_bounds = array<i64: 128, 128>}, {pipeline_mode = #tpu.pipeline_mode<synchronous>, transform_indices = @transform_6, window_bounds = array<i64: 1, 128>}, {pipeline_mode = #tpu.pipeline_mode<synchronous>, transform_indices = @transform_7, window_bounds = array<i64: 128, 128>}, {pipeline_mode = #tpu.pipeline_mode<synchronous>, transform_indices = @transform_8, window_bounds = array<i64: 1, 128>}, {transform_indices = @transform_9, window_bounds = array<i64: 8, 4>}, {transform_indices = @transform_10, window_bounds = array<i64: 128, 128>}]} {
    %c0_i32 = arith.constant 0 : i32
    %0 = arith.cmpi eq, %arg1, %c0_i32 : i32
    %1 = arith.extui %0 : i1 to i32
    %c0_i32_0 = arith.constant 0 : i32
    %2 = arith.cmpi ne, %1, %c0_i32_0 : i32
    scf.if %2 {
      %cst_41 = arith.constant 0.000000e+00 : f32
      %73 = vector.broadcast %cst_41 : f32 to vector<128x128xf32>
      %c0_42 = arith.constant 0 : index
      %c0_43 = arith.constant 0 : index
      %74 = vector.load %arg12[%c0_42, %c0_43] : memref<128x128xf32, #tpu.memory_space<vmem>>, vector<128x128xf32>
      tpu.vector_store %arg12[%c0_42, %c0_43], %73 {strides = array<i32>} : memref<128x128xf32, #tpu.memory_space<vmem>>, vector<128x128xf32>,
      %cst_44 = arith.constant 0.000000e+00 : f32
      %75 = vector.broadcast %cst_44 : f32 to vector<8x128xf32>
      %c0_45 = arith.constant 0 : index
      %c0_46 = arith.constant 0 : index
      %76 = vector.load %arg13[%c0_45, %c0_46] : memref<8x128xf32, #tpu.memory_space<vmem>>, vector<8x128xf32>
      tpu.vector_store %arg13[%c0_45, %c0_46], %75 {strides = array<i32>} : memref<8x128xf32, #tpu.memory_space<vmem>>, vector<8x128xf32>,
    } else {
    }
    %c0 = arith.constant 0 : index
    %c0_1 = arith.constant 0 : index
    %3 = vector.load %arg2[%c0, %c0_1] : memref<8x4xf32, #tpu.memory_space<vmem>>, vector<8x4xf32>
    %c0_2 = arith.constant 0 : index
    %c0_3 = arith.constant 0 : index
    %4 = vector.load %arg13[%c0_2, %c0_3] : memref<8x128xf32, #tpu.memory_space<vmem>>, vector<8x4xf32>
    tpu.vector_store %arg13[%c0_2, %c0_3], %3 {strides = array<i32>} : memref<8x128xf32, #tpu.memory_space<vmem>>, vector<8x4xf32>,
    %c0_4 = arith.constant 0 : index
    %c0_5 = arith.constant 0 : index
    %5 = vector.load %arg13[%c0_4, %c0_5] : memref<8x128xf32, #tpu.memory_space<vmem>>, vector<8x128xf32>
    %c0_6 = arith.constant 0 : index
    %c0_7 = arith.constant 0 : index
    %6 = vector.load %arg3[%c0_6, %c0_7] : memref<128x256xf32, #tpu.memory_space<vmem>>, vector<128x256xf32>
    %cst = arith.constant dense<0.000000e+00> : vector<8x256xf32>
    %7 = tpu.matmul %5, %6, %cst {dimension_numbers = #tpu.dot_dimension_numbers<[1], [0], [0], [1], [0, 0, 1, 1], [], []>} : vector<8x128xf32>, vector<128x256xf32>, vector<8x256xf32> -> vector<8x256xf32>
    %8 = vector.extract_strided_slice %7 {offsets = [0, 0], sizes = [8, 128], strides = [1, 1]} : vector<8x256xf32> to vector<8x128xf32>
    %9 = vector.extract_strided_slice %7 {offsets = [0, 128], sizes = [8, 128], strides = [1, 1]} : vector<8x256xf32> to vector<8x128xf32>
    %c0_8 = arith.constant 0 : index
    %c0_9 = arith.constant 0 : index
    %10 = vector.load %arg4[%c0_8, %c0_9] : memref<1x128xf32, #tpu.memory_space<vmem>>, vector<1x128xf32>
    %11 = vector.broadcast %10 : vector<1x128xf32> to vector<8x128xf32>
    %12 = arith.addf %9, %11 : vector<8x128xf32>
    %cst_10 = arith.constant 0.000000e+00 : f32
    %13 = vector.broadcast %cst_10 : f32 to vector<8x128xf32>
    %14 = arith.maximumf %12, %13 : vector<8x128xf32>
    %15 = tpu.iota {dimensions = array<i32: 1>} : vector<1x128xi32>
    %c4_i32 = arith.constant 4 : i32
    %16 = vector.broadcast %c4_i32 : i32 to vector<1x128xi32>
    %17 = arith.cmpi slt, %15, %16 : vector<1x128xi32>
    %cst_11 = arith.constant 0xFF800000 : f32
    %18 = vector.shape_cast %17 : vector<1x128xi1> to vector<1x128xi1>
    %19 = vector.broadcast %18 : vector<1x128xi1> to vector<8x128xi1>
    %20 = vector.broadcast %cst_11 : f32 to vector<8x128xf32>
    %21 = arith.select %19, %8, %20 : vector<8x128xi1>, vector<8x128xf32>
    %cst_12 = arith.constant dense<0xFF800000> : vector<8xf32>
    %22 = vector.multi_reduction <maximumf>, %21, %cst_12 [1] : vector<8x128xf32> to vector<8xf32>
    %23 = vector.shape_cast %22 : vector<8xf32> to vector<8x1xf32>
    %24 = vector.broadcast %23 : vector<8x1xf32> to vector<8x128xf32>
    %25 = arith.subf %21, %24 : vector<8x128xf32>
    %26 = math.exp %25 : vector<8x128xf32>
    %cst_13 = arith.constant dense<0.000000e+00> : vector<8xf32>
    %27 = vector.multi_reduction <add>, %26, %cst_13 [1] : vector<8x128xf32> to vector<8xf32>
    %28 = vector.shape_cast %27 : vector<8xf32> to vector<8x1xf32>
    %29 = vector.broadcast %28 : vector<8x1xf32> to vector<8x128xf32>
    %30 = arith.divf %26, %29 : vector<8x128xf32>
    %c1_i32 = arith.constant 1 : i32
    %31 = arith.muli %arg0, %c1_i32 : i32
    %32 = arith.addi %31, %arg1 : i32
    %c8_i32 = arith.constant 8 : i32
    %33 = arith.muli %32, %c8_i32 : i32
    %34 = tpu.iota {dimensions = array<i32: 0>} : vector<8x1xi32>
    %35 = vector.broadcast %33 : i32 to vector<8x1xi32>
    %36 = arith.addi %35, %34 : vector<8x1xi32>
    %c8_i32_14 = arith.constant 8 : i32
    %37 = vector.broadcast %c8_i32_14 : i32 to vector<8x1xi32>
    %38 = arith.cmpi slt, %36, %37 : vector<8x1xi32>
    %cst_15 = arith.constant 0.000000e+00 : f32
    %39 = vector.shape_cast %38 : vector<8x1xi1> to vector<8x1xi1>
    %40 = vector.broadcast %39 : vector<8x1xi1> to vector<8x128xi1>
    %41 = vector.broadcast %cst_15 : f32 to vector<8x128xf32>
    %42 = arith.select %40, %30, %41 : vector<8x128xi1>, vector<8x128xf32>
    %c0_16 = arith.constant 0 : index
    %c0_17 = arith.constant 0 : index
    %43 = vector.load %arg12[%c0_16, %c0_17] : memref<128x128xf32, #tpu.memory_space<vmem>>, vector<128x128xf32>
    %cst_18 = arith.constant dense<0.000000e+00> : vector<128x128xf32>
    %44 = tpu.matmul %42, %42, %cst_18 {dimension_numbers = #tpu.dot_dimension_numbers<[0], [0], [1], [1], [0, 1, 1, 1], [], []>} : vector<8x128xf32>, vector<8x128xf32>, vector<128x128xf32> -> vector<128x128xf32>
    %45 = arith.addf %43, %44 : vector<128x128xf32>
    %c0_19 = arith.constant 0 : index
    %c0_20 = arith.constant 0 : index
    %46 = vector.load %arg12[%c0_19, %c0_20] : memref<128x128xf32, #tpu.memory_space<vmem>>, vector<128x128xf32>
    tpu.vector_store %arg12[%c0_19, %c0_20], %45 {strides = array<i32>} : memref<128x128xf32, #tpu.memory_space<vmem>>, vector<128x128xf32>,
    %c0_21 = arith.constant 0 : index
    %c0_22 = arith.constant 0 : index
    %47 = vector.load %arg5[%c0_21, %c0_22] : memref<128x128xf32, #tpu.memory_space<vmem>>, vector<128x128xf32>
    %cst_23 = arith.constant dense<0.000000e+00> : vector<8x128xf32>
    %48 = tpu.matmul %14, %47, %cst_23 {dimension_numbers = #tpu.dot_dimension_numbers<[1], [0], [0], [1], [0, 0, 1, 1], [], []>} : vector<8x128xf32>, vector<128x128xf32>, vector<8x128xf32> -> vector<8x128xf32>
    %c0_24 = arith.constant 0 : index
    %c0_25 = arith.constant 0 : index
    %49 = vector.load %arg6[%c0_24, %c0_25] : memref<1x128xf32, #tpu.memory_space<vmem>>, vector<1x128xf32>
    %50 = vector.broadcast %49 : vector<1x128xf32> to vector<8x128xf32>
    %51 = arith.addf %48, %50 : vector<8x128xf32>
    %cst_26 = arith.constant 0.000000e+00 : f32
    %52 = vector.broadcast %cst_26 : f32 to vector<8x128xf32>
    %53 = arith.maximumf %51, %52 : vector<8x128xf32>
    %c0_27 = arith.constant 0 : index
    %c0_28 = arith.constant 0 : index
    %54 = vector.load %arg7[%c0_27, %c0_28] : memref<128x128xf32, #tpu.memory_space<vmem>>, vector<128x128xf32>
    %cst_29 = arith.constant dense<0.000000e+00> : vector<8x128xf32>
    %55 = tpu.matmul %53, %54, %cst_29 {dimension_numbers = #tpu.dot_dimension_numbers<[1], [0], [0], [1], [0, 0, 1, 1], [], []>} : vector<8x128xf32>, vector<128x128xf32>, vector<8x128xf32> -> vector<8x128xf32>
    %c0_30 = arith.constant 0 : index
    %c0_31 = arith.constant 0 : index
    %56 = vector.load %arg8[%c0_30, %c0_31] : memref<1x128xf32, #tpu.memory_space<vmem>>, vector<1x128xf32>
    %57 = vector.broadcast %56 : vector<1x128xf32> to vector<8x128xf32>
    %58 = arith.addf %55, %57 : vector<8x128xf32>
    %cst_32 = arith.constant 0.000000e+00 : f32
    %59 = vector.broadcast %cst_32 : f32 to vector<8x128xf32>
    %60 = arith.maximumf %58, %59 : vector<8x128xf32>
    %c0_33 = arith.constant 0 : index
    %c0_34 = arith.constant 0 : index
    %61 = vector.load %arg9[%c0_33, %c0_34] : memref<128x128xf32, #tpu.memory_space<vmem>>, vector<128x128xf32>
    %cst_35 = arith.constant dense<0.000000e+00> : vector<8x128xf32>
    %62 = tpu.matmul %60, %61, %cst_35 {dimension_numbers = #tpu.dot_dimension_numbers<[1], [0], [0], [1], [0, 0, 1, 1], [], []>} : vector<8x128xf32>, vector<128x128xf32>, vector<8x128xf32> -> vector<8x128xf32>
    %c0_36 = arith.constant 0 : index
    %c0_37 = arith.constant 0 : index
    %63 = vector.load %arg10[%c0_36, %c0_37] : memref<1x128xf32, #tpu.memory_space<vmem>>, vector<1x128xf32>
    %64 = vector.broadcast %63 : vector<1x128xf32> to vector<8x128xf32>
    %65 = arith.addf %62, %64 : vector<8x128xf32>
    %66 = arith.negf %65 : vector<8x128xf32>
    %67 = math.exp %66 : vector<8x128xf32>
    %cst_38 = arith.constant 1.000000e+00 : f32
    %68 = vector.broadcast %cst_38 : f32 to vector<8x128xf32>
    %69 = arith.addf %68, %67 : vector<8x128xf32>
    %70 = arith.divf %68, %69 : vector<8x128xf32>
    %71 = vector.extract_strided_slice %70 {offsets = [0, 0], sizes = [8, 4], strides = [1, 1]} : vector<8x128xf32> to vector<8x4xf32>
    %c0_39 = arith.constant 0 : index
    %c0_40 = arith.constant 0 : index
    %72 = vector.load %arg11[%c0_39, %c0_40] : memref<8x4xf32, #tpu.memory_space<vmem>>, vector<8x4xf32>
    tpu.vector_store %arg11[%c0_39, %c0_40], %71 {strides = array<i32>} : memref<8x4xf32, #tpu.memory_space<vmem>>, vector<8x4xf32>,
    return
  }
  func.func @transform_0(%arg0: i32, %arg1: i32) -> (i32, i32) {
    %c1_i32 = arith.constant 1 : i32
    %0 = arith.muli %arg0, %c1_i32 : i32
    %1 = arith.addi %0, %arg1 : i32
    %c0_i32 = arith.constant 0 : i32
    %c0_i32_0 = arith.constant 0 : i32
    return %1, %c0_i32 : i32, i32
  }
  func.func @transform_1(%arg0: i32, %arg1: i32) -> (i32, i32) {
    %c0_i32 = arith.constant 0 : i32
    %c0_i32_0 = arith.constant 0 : i32
    %c0_i32_1 = arith.constant 0 : i32
    return %c0_i32, %c0_i32_0 : i32, i32
  }
  func.func @transform_2(%arg0: i32, %arg1: i32) -> (i32, i32) {
    %c0_i32 = arith.constant 0 : i32
    %c0_i32_0 = arith.constant 0 : i32
    %c0_i32_1 = arith.constant 0 : i32
    return %c0_i32, %c0_i32_0 : i32, i32
  }
  func.func @transform_3(%arg0: i32, %arg1: i32) -> (i32, i32) {
    %c0_i32 = arith.constant 0 : i32
    %c0_i32_0 = arith.constant 0 : i32
    %c0_i32_1 = arith.constant 0 : i32
    return %c0_i32, %c0_i32_0 : i32, i32
  }
  func.func @transform_4(%arg0: i32, %arg1: i32) -> (i32, i32) {
    %c0_i32 = arith.constant 0 : i32
    %c0_i32_0 = arith.constant 0 : i32
    %c0_i32_1 = arith.constant 0 : i32
    return %c0_i32, %c0_i32_0 : i32, i32
  }
  func.func @transform_5(%arg0: i32, %arg1: i32) -> (i32, i32) {
    %c0_i32 = arith.constant 0 : i32
    %c0_i32_0 = arith.constant 0 : i32
    %c0_i32_1 = arith.constant 0 : i32
    return %c0_i32, %c0_i32_0 : i32, i32
  }
  func.func @transform_6(%arg0: i32, %arg1: i32) -> (i32, i32) {
    %c0_i32 = arith.constant 0 : i32
    %c0_i32_0 = arith.constant 0 : i32
    %c0_i32_1 = arith.constant 0 : i32
    return %c0_i32, %c0_i32_0 : i32, i32
  }
  func.func @transform_7(%arg0: i32, %arg1: i32) -> (i32, i32) {
    %c0_i32 = arith.constant 0 : i32
    %c0_i32_0 = arith.constant 0 : i32
    %c0_i32_1 = arith.constant 0 : i32
    return %c0_i32, %c0_i32_0 : i32, i32
  }
  func.func @transform_8(%arg0: i32, %arg1: i32) -> (i32, i32) {
    %c0_i32 = arith.constant 0 : i32
    %c0_i32_0 = arith.constant 0 : i32
    %c0_i32_1 = arith.constant 0 : i32
    return %c0_i32, %c0_i32_0 : i32, i32
  }
  func.func @transform_9(%arg0: i32, %arg1: i32) -> (i32, i32) {
    %c1_i32 = arith.constant 1 : i32
    %0 = arith.muli %arg0, %c1_i32 : i32
    %1 = arith.addi %0, %arg1 : i32
    %c0_i32 = arith.constant 0 : i32
    %c0_i32_0 = arith.constant 0 : i32
    return %1, %c0_i32 : i32, i32
  }
  func.func @transform_10(%arg0: i32, %arg1: i32) -> (i32, i32) {
    %c0_i32 = arith.constant 0 : i32
    %c0_i32_0 = arith.constant 0 : i32
    return %arg0, %c0_i32 : i32, i32
  }
}

</mosaic_0001>

<llo_original>
// kernel: tpu_custom_call.1
$region0: #{tpu_custom_call.1}
  #allocation0 [shape = 'u32[]', space=smem, size = 0x4, offset = 0x4, fixed_abs, tag = 'smem constant byte address 0x4 - core index']
  #allocation1 [shape = 'u32[72,128]{1,0:T(1,128)}', space=vmem, size = 0x9000, scoped, tag = 'internal scratch']
  #allocation2 [shape = 'f32[8,128]{1,0:T(8,128)}', space=vmem, size = 0x1000, scoped, tag = 'scratch operand']
  %s0 = inlined_call_operand.vmem [shape: f32[8,4], index: 0, kind: input, shape index: {}]
  %s1 = inlined_call_operand.hbm [shape: f32[128,256], index: 1, kind: input, shape index: {}]
  %s2 = inlined_call_operand.vmem [shape: f32[1,128], index: 2, kind: input, shape index: {}]
  %s3 = inlined_call_operand.hbm [shape: f32[128,128], index: 3, kind: input, shape index: {}]
  %s4 = inlined_call_operand.vmem [shape: f32[1,128], index: 4, kind: input, shape index: {}]
  %s5 = inlined_call_operand.hbm [shape: f32[128,128], index: 5, kind: input, shape index: {}]
  %s6 = inlined_call_operand.vmem [shape: f32[1,128], index: 6, kind: input, shape index: {}]
  %s7 = inlined_call_operand.hbm [shape: f32[128,128], index: 7, kind: input, shape index: {}]
  %s8 = inlined_call_operand.vmem [shape: f32[1,128], index: 8, kind: input, shape index: {}]
  %s9 = inlined_call_operand.vmem [shape: f32[8,4], index: 9, kind: output, shape index: {0}]
  %s10 = inlined_call_operand.hbm [shape: f32[128,128], index: 10, kind: output, shape index: {1}]
  %11 = xla_tuple %s9, %s10
  %s12 = sld [smem:[#allocation0]]
  $region74: #{tpu_custom_call.1} parent=0
    _
  %s14 = ssub.s32 1, %s12
  %s15 = scalar_select 0, %s14, %s12
  $region1: #{tpu_custom_call.1} parent=0
    #allocation3 [shape = 'u8[131072]{0}', space=vmem, size = 0x20000, scoped, tag = 'input window, operand 1, single buffered']
    #allocation4 [shape = 's32[1]{0}', space=sflag, size = 0x4, scoped, tag = 'scoped memory for tpu_custom_call.1']
    #allocation5 [shape = 's32[1]{0}', space=sflag, size = 0x4, scoped, tag = 'scoped memory for tpu_custom_call.1']
    #allocation6 [shape = 'u8[65536]{0}', space=vmem, size = 0x10000, scoped, tag = 'input window, operand 3, single buffered']
    #allocation7 [shape = 's32[1]{0}', space=sflag, size = 0x4, scoped, tag = 'scoped memory for tpu_custom_call.1']
    #allocation8 [shape = 'u8[65536]{0}', space=vmem, size = 0x10000, scoped, tag = 'input window, operand 5, single buffered']
    #allocation9 [shape = 'u8[65536]{0}', space=vmem, size = 0x10000, scoped, tag = 'input window, operand 7, single buffered']
    #allocation10 [shape = 's32[1]{0}', space=sflag, size = 0x4, scoped, tag = 'scoped memory for tpu_custom_call.1']
    #allocation11 [shape = 'u8[65536]{0}', space=vmem, size = 0x10000, scoped, tag = 'output window, operand 1, single buffered']
    %16 = vsyncpa [#allocation4], 0
    %17 = vsyncpa [#allocation7], 0
    %18 = vsyncpa [#allocation10], 0
    %19 = vsyncpa [#allocation5], 0
    // Predicated region
    $region2: #{tpu_custom_call.1} parent=1 // pred_check
      _
    $region3: #{tpu_custom_call.1} parent=1 // pred_check_branch
      %21 = sbr.rel (0) target = $region5
    $region4: #{tpu_custom_call.1} parent=1 // pred_region
      %s22 = sadd.s32 0, 0
      %p23 = scmp.lt.s32.totalorder %s22, 0
      %s24 = scalar_select %p23, %s22, 0
      %s25 = smul.addr %s24, 8
      %s26 = scalar_lea.vmem %s0, %s25
      %s27 = sadd.s32 0, 0
    $region5: #{tpu_custom_call.1} parent=1 // pred_fallthru
      _
    // Predicated region
    $region6: #{tpu_custom_call.1} parent=1 // pred_check
      _
    $region7: #{tpu_custom_call.1} parent=1 // pred_check_branch
      %29 = sbr.rel (0) target = $region9
    $region8: #{tpu_custom_call.1} parent=1 // pred_region
      %31 = vsyncadd [#allocation4], 0
      %s32 = sshll.u32 %s1, 4
      %s33 = int_to_ptr.hbm [resolvable:$true] %s32
      %s34 = sshll.u32 [#allocation3], 4
      %s35 = int_to_ptr.vmem [resolvable:$true] %s34
      %40 = dma.hbm_to_vmem [thread:$0]  %s33, 4096, %s35, [#allocation4], 256, 256, 16
    $region9: #{tpu_custom_call.1} parent=1 // pred_fallthru
      _
    // Predicated region
    $region10: #{tpu_custom_call.1} parent=1 // pred_check
      _
    $region11: #{tpu_custom_call.1} parent=1 // pred_check_branch
      %42 = sbr.rel (0) target = $region13
    $region12: #{tpu_custom_call.1} parent=1 // pred_region
      _
    $region13: #{tpu_custom_call.1} parent=1 // pred_fallthru
      _
    // Predicated region
    $region14: #{tpu_custom_call.1} parent=1 // pred_check
      _
    $region15: #{tpu_custom_call.1} parent=1 // pred_check_branch
      %44 = sbr.rel (0) target = $region17
    $region16: #{tpu_custom_call.1} parent=1 // pred_region
      %46 = vsyncadd [#allocation7], 0
      %s47 = sshll.u32 %s3, 4
      %s48 = int_to_ptr.hbm [resolvable:$true] %s47
      %s49 = sshll.u32 [#allocation6], 4
      %s50 = int_to_ptr.vmem [resolvable:$true] %s49
      %55 = dma.hbm_to_vmem [thread:$0]  %s48, 2048, %s50, [#allocation7], 128, 128, 8
    $region17: #{tpu_custom_call.1} parent=1 // pred_fallthru
      _
    // Predicated region
    $region18: #{tpu_custom_call.1} parent=1 // pred_check
      _
    $region19: #{tpu_custom_call.1} parent=1 // pred_check_branch
      %57 = sbr.rel (0) target = $region21
    $region20: #{tpu_custom_call.1} parent=1 // pred_region
      _
    $region21: #{tpu_custom_call.1} parent=1 // pred_fallthru
      _
    // Predicated region
    $region22: #{tpu_custom_call.1} parent=1 // pred_check
      _
    $region23: #{tpu_custom_call.1} parent=1 // pred_check_branch
      %59 = sbr.rel (0) target = $region25
    $region24: #{tpu_custom_call.1} parent=1 // pred_region
      %61 = vsyncadd [#allocation7], 0
      %s62 = sshll.u32 %s5, 4
      %s63 = int_to_ptr.hbm [resolvable:$true] %s62
      %s64 = sshll.u32 [#allocation8], 4
      %s65 = int_to_ptr.vmem [resolvable:$true] %s64
      %70 = dma.hbm_to_vmem [thread:$0]  %s63, 2048, %s65, [#allocation7], 128, 128, 8
    $region25: #{tpu_custom_call.1} parent=1 // pred_fallthru
      _
    // Predicated region
    $region26: #{tpu_custom_call.1} parent=1 // pred_check
      _
    $region27: #{tpu_custom_call.1} parent=1 // pred_check_branch
      %72 = sbr.rel (0) target = $region29
    $region28: #{tpu_custom_call.1} parent=1 // pred_region
      _
    $region29: #{tpu_custom_call.1} parent=1 // pred_fallthru
      _
    // Predicated region
    $region30: #{tpu_custom_call.1} parent=1 // pred_check
      _
    $region31: #{tpu_custom_call.1} parent=1 // pred_check_branch
      %74 = sbr.rel (0) target = $region33
    $region32: #{tpu_custom_call.1} parent=1 // pred_region
      %76 = vsyncadd [#allocation10], 0
      %s77 = sshll.u32 %s7, 4
      %s78 = int_to_ptr.hbm [resolvable:$true] %s77
      %s79 = sshll.u32 [#allocation9], 4
      %s80 = int_to_ptr.vmem [resolvable:$true] %s79
      %85 = dma.hbm_to_vmem [thread:$0]  %s78, 2048, %s80, [#allocation10], 128, 128, 8
    $region33: #{tpu_custom_call.1} parent=1 // pred_fallthru
      _
    // Predicated region
    $region34: #{tpu_custom_call.1} parent=1 // pred_check
      _
    $region35: #{tpu_custom_call.1} parent=1 // pred_check_branch
      %87 = sbr.rel (0) target = $region37
    $region36: #{tpu_custom_call.1} parent=1 // pred_region
      _
    $region37: #{tpu_custom_call.1} parent=1 // pred_fallthru
      _
    // Predicated region
    $region38: #{tpu_custom_call.1} parent=1 // pred_check
      _
    $region39: #{tpu_custom_call.1} parent=1 // pred_check_branch
      %89 = sbr.rel (0) target = $region41
    $region40: #{tpu_custom_call.1} parent=1 // pred_region
      %91 = dma.done [#allocation4], 4096
    $region41: #{tpu_custom_call.1} parent=1 // pred_fallthru
      _
    // Predicated region
    $region42: #{tpu_custom_call.1} parent=1 // pred_check
      _
    $region43: #{tpu_custom_call.1} parent=1 // pred_check_branch
      %93 = sbr.rel (0) target = $region45
    $region44: #{tpu_custom_call.1} parent=1 // pred_region
      %95 = dma.done [#allocation7], 2048
    $region45: #{tpu_custom_call.1} parent=1 // pred_fallthru
      _
    // Predicated region
    $region46: #{tpu_custom_call.1} parent=1 // pred_check
      _
    $region47: #{tpu_custom_call.1} parent=1 // pred_check_branch
      %97 = sbr.rel (0) target = $region49
    $region48: #{tpu_custom_call.1} parent=1 // pred_region
      %99 = dma.done [#allocation7], 2048
    $region49: #{tpu_custom_call.1} parent=1 // pred_fallthru
      _
    // Predicated region
    $region50: #{tpu_custom_call.1} parent=1 // pred_check
      _
    $region51: #{tpu_custom_call.1} parent=1 // pred_check_branch
      %101 = sbr.rel (0) target = $region53
    $region52: #{tpu_custom_call.1} parent=1 // pred_region
      %103 = dma.done [#allocation10], 2048
    $region53: #{tpu_custom_call.1} parent=1 // pred_fallthru
      _
    %s104 = sadd.s32 0, 0
    %p105 = scmp.lt.s32.totalorder %s104, 0
    %s106 = scalar_select %p105, %s104, 0
    %s107 = smul.addr %s106, 8
    %s108 = scalar_lea.vmem %s0, %s107
    %s109 = sadd.s32 0, 0
    %p110 = scmp.lt.s32.totalorder %s109, 0
    %s111 = scalar_select %p110, %s109, 0
    %s112 = smul.addr %s111, 8
    %s113 = scalar_lea.vmem %s9, %s112
    %s114 = sadd.s32 0, 0
    %p115 = scmp.lt.s32.totalorder %s114, 0
    %s116 = scalar_select %p115, %s114, 0
    %s117 = smul.addr %s116, 8
    %s118 = scalar_lea.vmem %s0, %s117
    %s119 = sadd.s32 0, 0
    %s120 = sadd.s32 0, 0
    %p121 = scmp.lt.s32.totalorder %s120, 0
    %s122 = scalar_select %p121, %s120, 0
    %s123 = smul.addr %s122, 8
    %s124 = scalar_lea.vmem %s9, %s123
    %s125 = sadd.s32 0, 0
    %p126 = scmp.eq.s32.totalorder 0, 0
    // Predicated region
    $region54: #{tpu_custom_call.1} parent=1 // pred_check
      %p127 = pneg %p126
    $region55: #{tpu_custom_call.1} parent=1 // pred_check_branch
      %129 = sbr.rel (%p127) target = $region57
    $region56: #{tpu_custom_call.1} parent=1 // pred_region
      %130 = vst [vmem:[#allocation11] sm:$0xff] 0.0
      %131 = vst [vmem:[#allocation11 + $0x8] sm:$0xff] 0.0
      %132 = vst [vmem:[#allocation11 + $0x10] sm:$0xff] 0.0
      %133 = vst [vmem:[#allocation11 + $0x18] sm:$0xff] 0.0
      %134 = vst [vmem:[#allocation11 + $0x20] sm:$0xff] 0.0
      %135 = vst [vmem:[#allocation11 + $0x28] sm:$0xff] 0.0
      %136 = vst [vmem:[#allocation11 + $0x30] sm:$0xff] 0.0
      %137 = vst [vmem:[#allocation11 + $0x38] sm:$0xff] 0.0
      %138 = vst [vmem:[#allocation11 + $0x40] sm:$0xff] 0.0
      %139 = vst [vmem:[#allocation11 + $0x48] sm:$0xff] 0.0
      %140 = vst [vmem:[#allocation11 + $0x50] sm:$0xff] 0.0
      %141 = vst [vmem:[#allocation11 + $0x58] sm:$0xff] 0.0
      %142 = vst [vmem:[#allocation11 + $0x60] sm:$0xff] 0.0
      %143 = vst [vmem:[#allocation11 + $0x68] sm:$0xff] 0.0
      %144 = vst [vmem:[#allocation11 + $0x70] sm:$0xff] 0.0
      %145 = vst [vmem:[#allocation11 + $0x78] sm:$0xff] 0.0
      %146 = vst [vmem:[#allocation2] sm:$0xff] 0.0
    $region57: #{tpu_custom_call.1} parent=1 // pred_fallthru
      _
    %v147 = vld [vmem:[%s118] sm:$0xff]
    %vm148 = vcmask 31744
    %149 = vst.msk [vmem:[#allocation2] sm:$0xff] %vm148, %v147
    %v150 = vld [vmem:[#allocation2] sm:$0xff]
    %v151 = vld [vmem:[#allocation3] sm:$0xff]
    %v152 = vld [vmem:[#allocation3 + $0x8] sm:$0xff]
    %v153 = vld [vmem:[#allocation3 + $0x10] sm:$0xff]
    %v154 = vld [vmem:[#allocation3 + $0x18] sm:$0xff]
    %v155 = vld [vmem:[#allocation3 + $0x20] sm:$0xff]
    %v156 = vld [vmem:[#allocation3 + $0x28] sm:$0xff]
    %v157 = vld [vmem:[#allocation3 + $0x30] sm:$0xff]
    %v158 = vld [vmem:[#allocation3 + $0x38] sm:$0xff]
    %v159 = vld [vmem:[#allocation3 + $0x40] sm:$0xff]
    %v160 = vld [vmem:[#allocation3 + $0x48] sm:$0xff]
    %v161 = vld [vmem:[#allocation3 + $0x50] sm:$0xff]
    %v162 = vld [vmem:[#allocation3 + $0x58] sm:$0xff]
    %v163 = vld [vmem:[#allocation3 + $0x60] sm:$0xff]
    %v164 = vld [vmem:[#allocation3 + $0x68] sm:$0xff]
    %v165 = vld [vmem:[#allocation3 + $0x70] sm:$0xff]
    %v166 = vld [vmem:[#allocation3 + $0x78] sm:$0xff]
    %v167 = vld [vmem:[#allocation3 + $0x80] sm:$0xff]
    %v168 = vld [vmem:[#allocation3 + $0x88] sm:$0xff]
    %v169 = vld [vmem:[#allocation3 + $0x90] sm:$0xff]
    %v170 = vld [vmem:[#allocation3 + $0x98] sm:$0xff]
    %v171 = vld [vmem:[#allocation3 + $0xa0] sm:$0xff]
    %v172 = vld [vmem:[#allocation3 + $0xa8] sm:$0xff]
    %v173 = vld [vmem:[#allocation3 + $0xb0] sm:$0xff]
    %v174 = vld [vmem:[#allocation3 + $0xb8] sm:$0xff]
    %v175 = vld [vmem:[#allocation3 + $0xc0] sm:$0xff]
    %v176 = vld [vmem:[#allocation3 + $0xc8] sm:$0xff]
    %v177 = vld [vmem:[#allocation3 + $0xd0] sm:$0xff]
    %v178 = vld [vmem:[#allocation3 + $0xd8] sm:$0xff]
    %v179 = vld [vmem:[#allocation3 + $0xe0] sm:$0xff]
    %v180 = vld [vmem:[#allocation3 + $0xe8] sm:$0xff]
    %v181 = vld [vmem:[#allocation3 + $0xf0] sm:$0xff]
    %v182 = vld [vmem:[#allocation3 + $0xf8] sm:$0xff]
    %183 = vmatpush.msra.mxu0 %v181
    %184 = vmatpush.msra.mxu0 %v179
    %185 = vmatpush.msra.mxu0 %v177
    %186 = vmatpush.msra.mxu0 %v175
    %187 = vmatpush.msra.mxu0 %v173
    %188 = vmatpush.msra.mxu0 %v171
    %189 = vmatpush.msra.mxu0 %v169
    %190 = vmatpush.msra.mxu0 %v167
    %191 = vmatpush.msra.mxu0 %v165
    %192 = vmatpush.msra.mxu0 %v163
    %193 = vmatpush.msra.mxu0 %v161
    %194 = vmatpush.msra.mxu0 %v159
    %195 = vmatpush.msra.mxu0 %v157
    %196 = vmatpush.msra.mxu0 %v155
    %197 = vmatpush.msra.mxu0 %v153
    %198 = vmatpush.msra.mxu0 %v151
    %199 = vmatmul.f32.gmra.mxu0 %v150
    %v200 = vpop.f32.mrf.mxu0
    %v201 = vadd.f32 0.0, %v200
    %202 = vdwg.mxu0
    %203 = vmatpush.msra.mxu0 %v182
    %204 = vmatpush.msra.mxu0 %v180
    %205 = vmatpush.msra.mxu0 %v178
    %206 = vmatpush.msra.mxu0 %v176
    %207 = vmatpush.msra.mxu0 %v174
    %208 = vmatpush.msra.mxu0 %v172
    %209 = vmatpush.msra.mxu0 %v170
    %210 = vmatpush.msra.mxu0 %v168
    %211 = vmatpush.msra.mxu0 %v166
    %212 = vmatpush.msra.mxu0 %v164
    %213 = vmatpush.msra.mxu0 %v162
    %214 = vmatpush.msra.mxu0 %v160
    %215 = vmatpush.msra.mxu0 %v158
    %216 = vmatpush.msra.mxu0 %v156
    %217 = vmatpush.msra.mxu0 %v154
    %218 = vmatpush.msra.mxu0 %v152
    %219 = vmatmul.f32.gmra.mxu0 %v150
    %v220 = vpop.f32.mrf.mxu0
    %v221 = vadd.f32 0.0, %v220
    %222 = vdwg.mxu0
    %v223 = vld [vmem:[%s2] sm:$0x1]
    %v225 = vperm.slane %v223, 0
    %v227 = vadd.f32 %v221, %v225
    %v228 = vmax.f32 %v227, 0.0
    %v229 = vlaneseq
    %v230 = vand.u32 %v229, 127
    %vm231 = vcmp.lt.s32.totalorder %v230, 4
    %v232 = vsel %vm231, 1, 0
    %vm233 = vcmp.eq.s32.totalorder %v232, 1
    %v234 = vsel %vm233, %v201, -inf
    %235 = vmax.xlane.f32.xlu0 %v234
    %v236 = vpop.xlane.xlu0 %235
    %v237 = vsub.f32 %v234, %v236
    %v238 = vmul.f32 %v237, 1.442695
    %v239 = vpow.pop %v238
    %240 = vadd.xlane.f32.xlu0 %v239
    %v241 = vpop.xlane.xlu0 %240
    %v242 = vrcp.pop %v241
    %v243 = vmul.f32 %v241, %v242
    %v244 = vsub.f32 1.0, %v243
    %v245 = vmul.f32 %v242, %v244
    %v246 = vadd.f32 %v242, %v245
    %vm247 = vweird.f32 %v241
    %vm248 = vweird.f32 %v242
    %vm249 = vmor %vm247, %vm248
    %v250 = vsel %vm249, %v242, %v246
    %v251 = vand.u32 2147483647, %v241
    %vm252 = vcmp.eq.f32.partialorder %v251, 8.507059e+37
    %v253 = vand.u32 %v241, 2147483648
    %v254 = vor.u32 1.1754944e-38, %v253
    %v255 = vsel %vm252, %v254, %v250
    %v256 = vmul.f32 %v239, %v255
    %s257 = sadd.s32 0, 0
    %s258 = smul.u32 %s257, 8
    %v259 = vlaneseq
    %v260 = vshrl.u32 %v259, 7
    %v261 = vstv %s258
    %v262 = vadd.s32 %v261, %v260
    %vm263 = vcmp.lt.s32.totalorder %v262, 8
    %v264 = vsel %vm263, 1, 0
    %vm265 = vcmp.eq.s32.totalorder %v264, 1
    %v266 = vsel %vm265, %v256, 0.0
    %v267 = vld [vmem:[#allocation11] sm:$0xff]
    %v268 = vld [vmem:[#allocation11 + $0x8] sm:$0xff]
    %v269 = vld [vmem:[#allocation11 + $0x10] sm:$0xff]
    %v270 = vld [vmem:[#allocation11 + $0x18] sm:$0xff]
    %v271 = vld [vmem:[#allocation11 + $0x20] sm:$0xff]
    %v272 = vld [vmem:[#allocation11 + $0x28] sm:$0xff]
    %v273 = vld [vmem:[#allocation11 + $0x30] sm:$0xff]
    %v274 = vld [vmem:[#allocation11 + $0x38] sm:$0xff]
    %v275 = vld [vmem:[#allocation11 + $0x40] sm:$0xff]
    %v276 = vld [vmem:[#allocation11 + $0x48] sm:$0xff]
    %v277 = vld [vmem:[#allocation11 + $0x50] sm:$0xff]
    %v278 = vld [vmem:[#allocation11 + $0x58] sm:$0xff]
    %v279 = vld [vmem:[#allocation11 + $0x60] sm:$0xff]
    %v280 = vld [vmem:[#allocation11 + $0x68] sm:$0xff]
    %v281 = vld [vmem:[#allocation11 + $0x70] sm:$0xff]
    %v282 = vld [vmem:[#allocation11 + $0x78] sm:$0xff]
    %283 = vxpose.xlu0.b32.start [1/16] %v266, 128
    %284 = vxpose.xlu0.b32.cont [2/16] 0.0, 128
    %285 = vxpose.xlu0.b32.cont [3/16] 0.0, 128
    %286 = vxpose.xlu0.b32.cont [4/16] 0.0, 128
    %287 = vxpose.xlu0.b32.cont [5/16] 0.0, 128
    %288 = vxpose.xlu0.b32.cont [6/16] 0.0, 128
    %289 = vxpose.xlu0.b32.cont [7/16] 0.0, 128
    %290 = vxpose.xlu0.b32.cont [8/16] 0.0, 128
    %291 = vxpose.xlu0.b32.cont [9/16] 0.0, 128
    %292 = vxpose.xlu0.b32.cont [10/16] 0.0, 128
    %293 = vxpose.xlu0.b32.cont [11/16] 0.0, 128
    %294 = vxpose.xlu0.b32.cont [12/16] 0.0, 128
    %295 = vxpose.xlu0.b32.cont [13/16] 0.0, 128
    %296 = vxpose.xlu0.b32.cont [14/16] 0.0, 128
    %297 = vxpose.xlu0.b32.cont [15/16] 0.0, 128
    %298 = vxpose.xlu0.b32.end [16/16] 0.0, 128
    %v299 = vpop.trf.xlu0
    %v300 = vpop.trf.xlu0
    %v301 = vpop.trf.xlu0
    %v302 = vpop.trf.xlu0
    %v303 = vpop.trf.xlu0
    %v304 = vpop.trf.xlu0
    %v305 = vpop.trf.xlu0
    %v306 = vpop.trf.xlu0
    %v307 = vpop.trf.xlu0
    %v308 = vpop.trf.xlu0
    %v309 = vpop.trf.xlu0
    %v310 = vpop.trf.xlu0
    %v311 = vpop.trf.xlu0
    %v312 = vpop.trf.xlu0
    %v313 = vpop.trf.xlu0
    %v314 = vpop.trf.xlu0
    %vm315 = vcmask 64512
    %v317 = vsel %vm315, %v299, 0
    %v320 = vsel %vm315, %v300, 0
    %v323 = vsel %vm315, %v301, 0
    %v326 = vsel %vm315, %v302, 0
    %v329 = vsel %vm315, %v303, 0
    %v332 = vsel %vm315, %v304, 0
    %v335 = vsel %vm315, %v305, 0
    %v338 = vsel %vm315, %v306, 0
    %v341 = vsel %vm315, %v307, 0
    %v344 = vsel %vm315, %v308, 0
    %v347 = vsel %vm315, %v309, 0
    %v350 = vsel %vm315, %v310, 0
    %v353 = vsel %vm315, %v311, 0
    %v356 = vsel %vm315, %v312, 0
    %v359 = vsel %vm315, %v313, 0
    %v362 = vsel %vm315, %v314, 0
    %364 = vmatpush.msra.mxu0 0.0
    %365 = vmatpush.msra.mxu0 0.0
    %366 = vmatpush.msra.mxu0 0.0
    %367 = vmatpush.msra.mxu0 0.0
    %368 = vmatpush.msra.mxu0 0.0
    %369 = vmatpush.msra.mxu0 0.0
    %370 = vmatpush.msra.mxu0 0.0
    %371 = vmatpush.msra.mxu0 0.0
    %372 = vmatpush.msra.mxu0 0.0
    %373 = vmatpush.msra.mxu0 0.0
    %374 = vmatpush.msra.mxu0 0.0
    %375 = vmatpush.msra.mxu0 0.0
    %376 = vmatpush.msra.mxu0 0.0
    %377 = vmatpush.msra.mxu0 0.0
    %378 = vmatpush.msra.mxu0 0.0
    %379 = vmatpush.msra.mxu0 %v266
    %380 = vmatmul.f32.gmra.mxu0 %v317
    %v381 = vpop.f32.mrf.mxu0
    %v382 = vadd.f32 0.0, %v381
    %383 = vmatmul.f32.gmra.mxu0 %v320
    %v384 = vpop.f32.mrf.mxu0
    %v385 = vadd.f32 0.0, %v384
    %386 = vmatmul.f32.gmra.mxu0 %v323
    %v387 = vpop.f32.mrf.mxu0
    %v388 = vadd.f32 0.0, %v387
    %389 = vmatmul.f32.gmra.mxu0 %v326
    %v390 = vpop.f32.mrf.mxu0
    %v391 = vadd.f32 0.0, %v390
    %392 = vmatmul.f32.gmra.mxu0 %v329
    %v393 = vpop.f32.mrf.mxu0
    %v394 = vadd.f32 0.0, %v393
    %395 = vmatmul.f32.gmra.mxu0 %v332
    %v396 = vpop.f32.mrf.mxu0
    %v397 = vadd.f32 0.0, %v396
    %398 = vmatmul.f32.gmra.mxu0 %v335
    %v399 = vpop.f32.mrf.mxu0
    %v400 = vadd.f32 0.0, %v399
    %401 = vmatmul.f32.gmra.mxu0 %v338
    %v402 = vpop.f32.mrf.mxu0
    %v403 = vadd.f32 0.0, %v402
    %404 = vmatmul.f32.gmra.mxu0 %v341
    %v405 = vpop.f32.mrf.mxu0
    %v406 = vadd.f32 0.0, %v405
    %407 = vmatmul.f32.gmra.mxu0 %v344
    %v408 = vpop.f32.mrf.mxu0
    %v409 = vadd.f32 0.0, %v408
    %410 = vmatmul.f32.gmra.mxu0 %v347
    %v411 = vpop.f32.mrf.mxu0
    %v412 = vadd.f32 0.0, %v411
    %413 = vmatmul.f32.gmra.mxu0 %v350
    %v414 = vpop.f32.mrf.mxu0
    %v415 = vadd.f32 0.0, %v414
    %416 = vmatmul.f32.gmra.mxu0 %v353
    %v417 = vpop.f32.mrf.mxu0
    %v418 = vadd.f32 0.0, %v417
    %419 = vmatmul.f32.gmra.mxu0 %v356
    %v420 = vpop.f32.mrf.mxu0
    %v421 = vadd.f32 0.0, %v420
    %422 = vmatmul.f32.gmra.mxu0 %v359
    %v423 = vpop.f32.mrf.mxu0
    %v424 = vadd.f32 0.0, %v423
    %425 = vmatmul.f32.gmra.mxu0 %v362
    %v426 = vpop.f32.mrf.mxu0
    %v427 = vadd.f32 0.0, %v426
    %428 = vdwg.mxu0
    %v429 = vadd.f32 %v267, %v382
    %v430 = vadd.f32 %v268, %v385
    %v431 = vadd.f32 %v269, %v388
    %v432 = vadd.f32 %v270, %v391
    %v433 = vadd.f32 %v271, %v394
    %v434 = vadd.f32 %v272, %v397
    %v435 = vadd.f32 %v273, %v400
    %v436 = vadd.f32 %v274, %v403
    %v437 = vadd.f32 %v275, %v406
    %v438 = vadd.f32 %v276, %v409
    %v439 = vadd.f32 %v277, %v412
    %v440 = vadd.f32 %v278, %v415
    %v441 = vadd.f32 %v279, %v418
    %v442 = vadd.f32 %v280, %v421
    %v443 = vadd.f32 %v281, %v424
    %v444 = vadd.f32 %v282, %v427
    %445 = vst [vmem:[#allocation11] sm:$0xff] %v429
    %446 = vst [vmem:[#allocation11 + $0x8] sm:$0xff] %v430
    %447 = vst [vmem:[#allocation11 + $0x10] sm:$0xff] %v431
    %448 = vst [vmem:[#allocation11 + $0x18] sm:$0xff] %v432
    %449 = vst [vmem:[#allocation11 + $0x20] sm:$0xff] %v433
    %450 = vst [vmem:[#allocation11 + $0x28] sm:$0xff] %v434
    %451 = vst [vmem:[#allocation11 + $0x30] sm:$0xff] %v435
    %452 = vst [vmem:[#allocation11 + $0x38] sm:$0xff] %v436
    %453 = vst [vmem:[#allocation11 + $0x40] sm:$0xff] %v437
    %454 = vst [vmem:[#allocation11 + $0x48] sm:$0xff] %v438
    %455 = vst [vmem:[#allocation11 + $0x50] sm:$0xff] %v439
    %456 = vst [vmem:[#allocation11 + $0x58] sm:$0xff] %v440
    %457 = vst [vmem:[#allocation11 + $0x60] sm:$0xff] %v441
    %458 = vst [vmem:[#allocation11 + $0x68] sm:$0xff] %v442
    %459 = vst [vmem:[#allocation11 + $0x70] sm:$0xff] %v443
    %460 = vst [vmem:[#allocation11 + $0x78] sm:$0xff] %v444
    %v461 = vld [vmem:[#allocation6] sm:$0xff]
    %v462 = vld [vmem:[#allocation6 + $0x8] sm:$0xff]
    %v463 = vld [vmem:[#allocation6 + $0x10] sm:$0xff]
    %v464 = vld [vmem:[#allocation6 + $0x18] sm:$0xff]
    %v465 = vld [vmem:[#allocation6 + $0x20] sm:$0xff]
    %v466 = vld [vmem:[#allocation6 + $0x28] sm:$0xff]
    %v467 = vld [vmem:[#allocation6 + $0x30] sm:$0xff]
    %v468 = vld [vmem:[#allocation6 + $0x38] sm:$0xff]
    %v469 = vld [vmem:[#allocation6 + $0x40] sm:$0xff]
    %v470 = vld [vmem:[#allocation6 + $0x48] sm:$0xff]
    %v471 = vld [vmem:[#allocation6 + $0x50] sm:$0xff]
    %v472 = vld [vmem:[#allocation6 + $0x58] sm:$0xff]
    %v473 = vld [vmem:[#allocation6 + $0x60] sm:$0xff]
    %v474 = vld [vmem:[#allocation6 + $0x68] sm:$0xff]
    %v475 = vld [vmem:[#allocation6 + $0x70] sm:$0xff]
    %v476 = vld [vmem:[#allocation6 + $0x78] sm:$0xff]
    %v477 = vld [vmem:[%s4] sm:$0x1]
    %v479 = vperm.slane %v477, 0
    %481 = vmatpush.msra.mxu0 %v476
    %482 = vmatpush.msra.mxu0 %v475
    %483 = vmatpush.msra.mxu0 %v474
    %484 = vmatpush.msra.mxu0 %v473
    %485 = vmatpush.msra.mxu0 %v472
    %486 = vmatpush.msra.mxu0 %v471
    %487 = vmatpush.msra.mxu0 %v470
    %488 = vmatpush.msra.mxu0 %v469
    %489 = vmatpush.msra.mxu0 %v468
    %490 = vmatpush.msra.mxu0 %v467
    %491 = vmatpush.msra.mxu0 %v466
    %492 = vmatpush.msra.mxu0 %v465
    %493 = vmatpush.msra.mxu0 %v464
    %494 = vmatpush.msra.mxu0 %v463
    %495 = vmatpush.msra.mxu0 %v462
    %496 = vmatpush.msra.mxu0 %v461
    %497 = vmatmul.f32.gmra.mxu0 %v228
    %v498 = vpop.f32.mrf.mxu0
    %v499 = vadd.f32 %v479, %v498
    %500 = vdwg.mxu0
    %v501 = vmax.f32 %v499, 0.0
    %v502 = vld [vmem:[#allocation8] sm:$0xff]
    %v503 = vld [vmem:[#allocation8 + $0x8] sm:$0xff]
    %v504 = vld [vmem:[#allocation8 + $0x10] sm:$0xff]
    %v505 = vld [vmem:[#allocation8 + $0x18] sm:$0xff]
    %v506 = vld [vmem:[#allocation8 + $0x20] sm:$0xff]
    %v507 = vld [vmem:[#allocation8 + $0x28] sm:$0xff]
    %v508 = vld [vmem:[#allocation8 + $0x30] sm:$0xff]
    %v509 = vld [vmem:[#allocation8 + $0x38] sm:$0xff]
    %v510 = vld [vmem:[#allocation8 + $0x40] sm:$0xff]
    %v511 = vld [vmem:[#allocation8 + $0x48] sm:$0xff]
    %v512 = vld [vmem:[#allocation8 + $0x50] sm:$0xff]
    %v513 = vld [vmem:[#allocation8 + $0x58] sm:$0xff]
    %v514 = vld [vmem:[#allocation8 + $0x60] sm:$0xff]
    %v515 = vld [vmem:[#allocation8 + $0x68] sm:$0xff]
    %v516 = vld [vmem:[#allocation8 + $0x70] sm:$0xff]
    %v517 = vld [vmem:[#allocation8 + $0x78] sm:$0xff]
    %v518 = vld [vmem:[%s6] sm:$0x1]
    %v520 = vperm.slane %v518, 0
    %522 = vmatpush.msra.mxu0 %v517
    %523 = vmatpush.msra.mxu0 %v516
    %524 = vmatpush.msra.mxu0 %v515
    %525 = vmatpush.msra.mxu0 %v514
    %526 = vmatpush.msra.mxu0 %v513
    %527 = vmatpush.msra.mxu0 %v512
    %528 = vmatpush.msra.mxu0 %v511
    %529 = vmatpush.msra.mxu0 %v510
    %530 = vmatpush.msra.mxu0 %v509
    %531 = vmatpush.msra.mxu0 %v508
    %532 = vmatpush.msra.mxu0 %v507
    %533 = vmatpush.msra.mxu0 %v506
    %534 = vmatpush.msra.mxu0 %v505
    %535 = vmatpush.msra.mxu0 %v504
    %536 = vmatpush.msra.mxu0 %v503
    %537 = vmatpush.msra.mxu0 %v502
    %538 = vmatmul.f32.gmra.mxu0 %v501
    %v539 = vpop.f32.mrf.mxu0
    %v540 = vadd.f32 %v520, %v539
    %541 = vdwg.mxu0
    %v542 = vmax.f32 %v540, 0.0
    %v543 = vld [vmem:[#allocation9] sm:$0xff]
    %v544 = vld [vmem:[#allocation9 + $0x8] sm:$0xff]
    %v545 = vld [vmem:[#allocation9 + $0x10] sm:$0xff]
    %v546 = vld [vmem:[#allocation9 + $0x18] sm:$0xff]
    %v547 = vld [vmem:[#allocation9 + $0x20] sm:$0xff]
    %v548 = vld [vmem:[#allocation9 + $0x28] sm:$0xff]
    %v549 = vld [vmem:[#allocation9 + $0x30] sm:$0xff]
    %v550 = vld [vmem:[#allocation9 + $0x38] sm:$0xff]
    %v551 = vld [vmem:[#allocation9 + $0x40] sm:$0xff]
    %v552 = vld [vmem:[#allocation9 + $0x48] sm:$0xff]
    %v553 = vld [vmem:[#allocation9 + $0x50] sm:$0xff]
    %v554 = vld [vmem:[#allocation9 + $0x58] sm:$0xff]
    %v555 = vld [vmem:[#allocation9 + $0x60] sm:$0xff]
    %v556 = vld [vmem:[#allocation9 + $0x68] sm:$0xff]
    %v557 = vld [vmem:[#allocation9 + $0x70] sm:$0xff]
    %v558 = vld [vmem:[#allocation9 + $0x78] sm:$0xff]
    %v559 = vld [vmem:[%s8] sm:$0x1]
    %v561 = vperm.slane %v559, 0
    %563 = vmatpush.msra.mxu0 %v558
    %564 = vmatpush.msra.mxu0 %v557
    %565 = vmatpush.msra.mxu0 %v556
    %566 = vmatpush.msra.mxu0 %v555
    %567 = vmatpush.msra.mxu0 %v554
    %568 = vmatpush.msra.mxu0 %v553
    %569 = vmatpush.msra.mxu0 %v552
    %570 = vmatpush.msra.mxu0 %v551
    %571 = vmatpush.msra.mxu0 %v550
    %572 = vmatpush.msra.mxu0 %v549
    %573 = vmatpush.msra.mxu0 %v548
    %574 = vmatpush.msra.mxu0 %v547
    %575 = vmatpush.msra.mxu0 %v546
    %576 = vmatpush.msra.mxu0 %v545
    %577 = vmatpush.msra.mxu0 %v544
    %578 = vmatpush.msra.mxu0 %v543
    %579 = vmatmul.f32.gmra.mxu0 %v542
    %v580 = vpop.f32.mrf.mxu0
    %v581 = vadd.f32 %v561, %v580
    %582 = vdwg.mxu0
    %v583 = vxor.u32 %v581, 2147483648
    %v584 = vmul.f32 %v583, 1.442695
    %v585 = vpow.pop %v584
    %v586 = vadd.f32 %v585, 1.0
    %v587 = vrcp.pop %v586
    %v588 = vmul.f32 %v586, %v587
    %v589 = vsub.f32 1.0, %v588
    %v590 = vmul.f32 %v587, %v589
    %v591 = vadd.f32 %v587, %v590
    %vm592 = vweird.f32 %v586
    %vm593 = vweird.f32 %v587
    %vm594 = vmor %vm592, %vm593
    %v595 = vsel %vm594, %v587, %v591
    %v596 = vand.u32 2147483647, %v586
    %vm597 = vcmp.eq.f32.partialorder %v596, 8.507059e+37
    %v598 = vand.u32 %v586, 2147483648
    %v599 = vor.u32 1.1754944e-38, %v598
    %v600 = vsel %vm597, %v599, %v595
    %v601 = vmul.f32 1.0, %v600
    %602 = vst.msk [vmem:[%s124] sm:$0xff] %vm148, %v601
    %s603 = sadd.s32 0, 0
    %p604 = scmp.lt.s32.totalorder %s603, 0
    %s605 = scalar_select %p604, %s603, 0
    %s606 = smul.addr %s605, 8
    %s607 = scalar_lea.vmem %s9, %s606
    // Predicated region
    $region58: #{tpu_custom_call.1} parent=1 // pred_check
      _
    $region59: #{tpu_custom_call.1} parent=1 // pred_check_branch
      %609 = sbr.rel (0) target = $region61
    $region60: #{tpu_custom_call.1} parent=1 // pred_region
      %s610 = sadd.s32 0, 0
    $region61: #{tpu_custom_call.1} parent=1 // pred_fallthru
      _
    // Predicated region
    $region62: #{tpu_custom_call.1} parent=1 // pred_check
      _
    $region63: #{tpu_custom_call.1} parent=1 // pred_check_branch
      %612 = sbr.rel (0) target = $region65
    $region64: #{tpu_custom_call.1} parent=1 // pred_region
      %614 = vsyncadd [#allocation5], 0
      %s615 = sshll.u32 [#allocation11], 4
      %s616 = int_to_ptr.vmem [resolvable:$true] %s615
      %s617 = sshll.u32 %s10, 4
      %s618 = int_to_ptr.hbm [resolvable:$true] %s617
      %623 = dma.vmem_to_hbm [thread:$0]  %s616, 2048, %s618, [#allocation5], 128, 128, 8
    $region65: #{tpu_custom_call.1} parent=1 // pred_fallthru
      _
    // Predicated region
    $region66: #{tpu_custom_call.1} parent=1 // pred_check
      _
    $region67: #{tpu_custom_call.1} parent=1 // pred_check_branch
      %625 = sbr.rel (0) target = $region69
    $region68: #{tpu_custom_call.1} parent=1 // pred_region
      %s626 = sadd.s32 0, 0
      %p627 = scmp.lt.s32.totalorder %s626, 0
      %s628 = scalar_select %p627, %s626, 0
      %s629 = smul.addr %s628, 8
      %s630 = scalar_lea.vmem %s9, %s629
    $region69: #{tpu_custom_call.1} parent=1 // pred_fallthru
      _
    // Predicated region
    $region70: #{tpu_custom_call.1} parent=1 // pred_check
      _
    $region71: #{tpu_custom_call.1} parent=1 // pred_check_branch
      %632 = sbr.rel (0) target = $region73
    $region72: #{tpu_custom_call.1} parent=1 // pred_region
      %634 = dma.done [#allocation5], 2048
    $region73: #{tpu_custom_call.1} parent=1 // pred_fallthru
      _
    %635 = vsyncpa [#allocation4], 1
    %636 = vsyncpa [#allocation7], 1
    %637 = vsyncpa [#allocation10], 1
    %638 = vsyncpa [#allocation5], 1

</llo_original>
